<compile_context>
chip_gen: v7x
topology: tpu7x:2x2x1
jax: 0.10.0
libtpu: 0.0.40
codegen_flags: <defaults>
</compile_context>

<pallas_src>
import jax
import jax.numpy as jnp
from jax.experimental import pallas as pl
from jax.experimental.pallas import tpu as pltpu


# ---------------------------------------------------------------------------
# Fused Pallas kernel: 4 stacked LSTM cell steps (t = 0) + ReLU + Linear head
# ---------------------------------------------------------------------------

def make_fused_lstm_head_kernel(num_layers):
    """Builds a kernel with signature:

        kernel(x0, w_ih_0, w_hh_0, b_0, ..., w_ih_{L-1}, w_hh_{L-1}, b_{L-1},
               w_fc, out)

    x0:     [B_pad, 4H]   t=0 slice of the concatenated BERT hidden states
    w_ih_l: [D_in, 4H]    transposed weight_ih (D_in = 4H for l=0, else H)
    w_hh_l: [H, 4H]       transposed weight_hh
    b_l:    [1, 4H]       bias_ih + bias_hh
    w_fc:   [H, C]        transposed fc weight (bias-free Linear)
    out:    [B_pad, C]    logits
    """

    def kernel(*refs):
        x0_ref = refs[0]
        layer_refs = refs[1:1 + 3 * num_layers]
        w_fc_ref = refs[1 + 3 * num_layers]
        out_ref = refs[2 + 3 * num_layers]

        B = x0_ref.shape[0]
        H = layer_refs[1].shape[0]          # w_hh_0 is [H, 4H]

        x = x0_ref[...]                     # [B, D_in]; layer 0: D_in = 4H
        for l in range(num_layers):         # static unroll over the 4 layers
            w_ih_ref, w_hh_ref, b_ref = layer_refs[3 * l:3 * l + 3]

            # nn.LSTM default initial state is zero for every layer.
            h_prev = jnp.zeros((B, H), jnp.float32)
            c_prev = jnp.zeros((B, H), jnp.float32)

            # Full LSTM cell at t=0.  (The h_prev @ W_hh term is mathematically zero
            # for the zero initial state but is kept so this is a faithful cell step;
            # it is a single [B,H]x[H,4H] micro-matmul per layer.)
            gates = (jnp.dot(x, w_ih_ref[...],
                             preferred_element_type=jnp.float32)
                     + jnp.dot(h_prev, w_hh_ref[...],
                               preferred_element_type=jnp.float32)
                     + b_ref[...])                                   # [B, 4H] = one 128-lane vreg

            # Two full-vreg EUP activations (instead of four 32-lane ones), then slice.
            sig = jax.nn.sigmoid(gates)
            tnh = jnp.tanh(gates)
            i_g = sig[:, 0 * H:1 * H]       # input gate
            f_g = sig[:, 1 * H:2 * H]       # forget gate
            g_g = tnh[:, 2 * H:3 * H]       # cell candidate
            o_g = sig[:, 3 * H:4 * H]       # output gate

            c = f_g * c_prev + i_g * g_g
            h = o_g * jnp.tanh(c)
            x = h                            # dropout(p=0.3) between layers: identity at inference

        # Head: ReLU on the first-token hidden state, then bias-free Linear.
        h_relu = jnp.maximum(x, 0.0)         # dropout(p=0.5) in fc: identity at inference
        out_ref[...] = jnp.dot(h_relu, w_fc_ref[...],
                               preferred_element_type=jnp.float32)

    return kernel


# ---------------------------------------------------------------------------
# Wrapper around pallas_call
# ---------------------------------------------------------------------------

_VMEM_SPEC = pl.BlockSpec(memory_space=pltpu.MemorySpace.VMEM)


def run_fused_lstm_head(x0_pad, layer_params, w_fc_t):
    """x0_pad: [B_pad, 4H]; layer_params: list of (w_ih_t, w_hh_t, b); w_fc_t: [H, C]."""
    num_layers = len(layer_params)
    B_pad = x0_pad.shape[0]
    C = w_fc_t.shape[1]

    flat_weights = []
    for w_ih_t, w_hh_t, b in layer_params:
        flat_weights += [w_ih_t, w_hh_t, b]

    n_inputs = 2 + len(flat_weights)         # x0 + layer weights + w_fc
    return pl.pallas_call(
        make_fused_lstm_head_kernel(num_layers),
        out_shape=jax.ShapeDtypeStruct((B_pad, C), jnp.float32),
        in_specs=[_VMEM_SPEC] * n_inputs,
        out_specs=_VMEM_SPEC,
    )(x0_pad, *flat_weights, w_fc_t)


# ---------------------------------------------------------------------------
# Parameters (deterministic, synthetic) and forward pass
# ---------------------------------------------------------------------------

def init_params(key, hidden_size, num_layers, num_classes, vocab_size):
    H = hidden_size
    p = {}
    k = key

    def nxt():
        nonlocal k
        k, sub = jax.random.split(k)
        return sub

    # Stand-in "BERT" embedding tables for the 4 hidden-state layers (-1..-4).
    for i in range(4):
        p[f"bert_emb_{i}"] = 0.02 * jax.random.normal(
            nxt(), (vocab_size, H), jnp.float32)

    bound = 1.0 / (H ** 0.5)
    for l in range(num_layers):
        d_in = 4 * H if l == 0 else H
        w_ih = jax.random.uniform(nxt(), (4 * H, d_in), jnp.float32, -bound, bound)
        w_hh = jax.random.uniform(nxt(), (4 * H, H), jnp.float32, -bound, bound)
        b_ih = jax.random.uniform(nxt(), (4 * H,), jnp.float32, -bound, bound)
        b_hh = jax.random.uniform(nxt(), (4 * H,), jnp.float32, -bound, bound)
        p[f"w_ih_{l}"] = jnp.transpose(w_ih)                 # [d_in, 4H]
        p[f"w_hh_{l}"] = jnp.transpose(w_hh)                 # [H, 4H]
        p[f"b_{l}"] = (b_ih + b_hh).reshape(1, 4 * H)        # [1, 4H]

    w_fc = jax.random.uniform(nxt(), (num_classes, H), jnp.float32, -bound, bound)
    p["w_fc"] = jnp.transpose(w_fc)                          # [H, C]
    return p


def my_model_forward(params, input_ids, attn_masks, token_type_ids, num_layers=4):
    # TODO(synk): pretrained `nlptown/bert-base-multilingual-uncased-sentiment` encoder has
    # no in-script equivalent; it is replaced by deterministic embedding lookups producing
    # the 4 hidden-state tensors (attn_masks / token_type_ids are accepted but unused).
    del attn_masks, token_type_ids
    B = input_ids.shape[0]

    embs = [params[f"bert_emb_{i}"][input_ids] for i in range(4)]   # 4 x [B, S, H]
    hidden_states = jnp.concatenate(embs, axis=-1)                  # [B, S, 4H]

    # Only out[:, 0, :] of the zero-initialized, unidirectional LSTM is ever read, and
    # h_{t=0} of every stacked layer depends only on the t=0 input of that layer, so the
    # full recurrence reduces exactly to 4 single cell steps on hidden_states[:, 0, :].
    x0 = hidden_states[:, 0, :].astype(jnp.float32)                 # [B, 4H]

    # Pad the batch to a full 8-row sublane group so kernel operands are vreg-dense.
    B_pad = ((B + 7) // 8) * 8
    x0_pad = jnp.pad(x0, ((0, B_pad - B), (0, 0)))

    layer_params = [(params[f"w_ih_{l}"], params[f"w_hh_{l}"], params[f"b_{l}"])
                    for l in range(num_layers)]
    logits = run_fused_lstm_head(x0_pad, layer_params, params["w_fc"])  # [B_pad, C]
    return logits[:B]


# ---------------------------------------------------------------------------
# Main
# ---------------------------------------------------------------------------

if __name__ == "__main__":
    B, S, H, C, V, L = 2, 8, 32, 2, 100, 4

    key = jax.random.PRNGKey(0)
    kp, kd = jax.random.split(key)
    params = init_params(kp, hidden_size=H, num_layers=L, num_classes=C, vocab_size=V)

    input_ids = jax.random.randint(kd, (B, S), 0, V, dtype=jnp.int32)
    attn_masks = jnp.ones((B, S), dtype=jnp.int32)
    token_type_ids = jnp.zeros((B, S), dtype=jnp.int32)

    logits = my_model_forward(params, input_ids, attn_masks, token_type_ids, num_layers=L)
    logits = jax.block_until_ready(logits)
    assert logits.shape == (B, C), logits.shape
    print("KERNEL_OK")
</pallas_src>

<mosaic_0001>
module attributes {stable_mosaic.version = 11 : i64} {
  func.func @kernel(%arg0: memref<8x128xf32, #tpu.memory_space<vmem>>, %arg1: memref<128x128xf32, #tpu.memory_space<vmem>>, %arg2: memref<32x128xf32, #tpu.memory_space<vmem>>, %arg3: memref<1x128xf32, #tpu.memory_space<vmem>>, %arg4: memref<32x128xf32, #tpu.memory_space<vmem>>, %arg5: memref<32x128xf32, #tpu.memory_space<vmem>>, %arg6: memref<1x128xf32, #tpu.memory_space<vmem>>, %arg7: memref<32x128xf32, #tpu.memory_space<vmem>>, %arg8: memref<32x128xf32, #tpu.memory_space<vmem>>, %arg9: memref<1x128xf32, #tpu.memory_space<vmem>>, %arg10: memref<32x128xf32, #tpu.memory_space<vmem>>, %arg11: memref<32x128xf32, #tpu.memory_space<vmem>>, %arg12: memref<1x128xf32, #tpu.memory_space<vmem>>, %arg13: memref<32x2xf32, #tpu.memory_space<vmem>>, %arg14: memref<8x2xf32, #tpu.memory_space<vmem>>) attributes {dimension_semantics = [], scalar_prefetch = 0 : i64, scratch_operands = 0 : i64, tpu.core_type = #tpu.core_type<tc>} {
    %c0 = arith.constant 0 : index
    %c0_0 = arith.constant 0 : index
    %0 = vector.load %arg0[%c0, %c0_0] : memref<8x128xf32, #tpu.memory_space<vmem>>, vector<8x128xf32>
    %cst = arith.constant 0.000000e+00 : f32
    %1 = vector.broadcast %cst : f32 to vector<8x32xf32>
    %cst_1 = arith.constant 0.000000e+00 : f32
    %2 = vector.broadcast %cst_1 : f32 to vector<8x32xf32>
    %c0_2 = arith.constant 0 : index
    %c0_3 = arith.constant 0 : index
    %3 = vector.load %arg1[%c0_2, %c0_3] : memref<128x128xf32, #tpu.memory_space<vmem>>, vector<128x128xf32>
    %cst_4 = arith.constant dense<0.000000e+00> : vector<8x128xf32>
    %4 = tpu.matmul %0, %3, %cst_4 {dimension_numbers = #tpu.dot_dimension_numbers<[1], [0], [0], [1], [0, 0, 1, 1], [], []>} : vector<8x128xf32>, vector<128x128xf32>, vector<8x128xf32> -> vector<8x128xf32>
    %c0_5 = arith.constant 0 : index
    %c0_6 = arith.constant 0 : index
    %5 = vector.load %arg2[%c0_5, %c0_6] : memref<32x128xf32, #tpu.memory_space<vmem>>, vector<32x128xf32>
    %cst_7 = arith.constant dense<0.000000e+00> : vector<8x128xf32>
    %6 = tpu.matmul %1, %5, %cst_7 {dimension_numbers = #tpu.dot_dimension_numbers<[1], [0], [0], [1], [0, 0, 1, 1], [], []>} : vector<8x32xf32>, vector<32x128xf32>, vector<8x128xf32> -> vector<8x128xf32>
    %7 = arith.addf %4, %6 : vector<8x128xf32>
    %c0_8 = arith.constant 0 : index
    %c0_9 = arith.constant 0 : index
    %8 = vector.load %arg3[%c0_8, %c0_9] : memref<1x128xf32, #tpu.memory_space<vmem>>, vector<1x128xf32>
    %9 = vector.broadcast %8 : vector<1x128xf32> to vector<8x128xf32>
    %10 = arith.addf %7, %9 : vector<8x128xf32>
    %11 = arith.negf %10 : vector<8x128xf32>
    %12 = math.exp %11 : vector<8x128xf32>
    %cst_10 = arith.constant 1.000000e+00 : f32
    %13 = vector.broadcast %cst_10 : f32 to vector<8x128xf32>
    %14 = arith.addf %13, %12 : vector<8x128xf32>
    %15 = arith.divf %13, %14 : vector<8x128xf32>
    %16 = math.tanh %10 : vector<8x128xf32>
    %17 = vector.extract_strided_slice %15 {offsets = [0, 0], sizes = [8, 32], strides = [1, 1]} : vector<8x128xf32> to vector<8x32xf32>
    %18 = vector.extract_strided_slice %15 {offsets = [0, 32], sizes = [8, 32], strides = [1, 1]} : vector<8x128xf32> to vector<8x32xf32>
    %19 = vector.extract_strided_slice %16 {offsets = [0, 64], sizes = [8, 32], strides = [1, 1]} : vector<8x128xf32> to vector<8x32xf32>
    %20 = vector.extract_strided_slice %15 {offsets = [0, 96], sizes = [8, 32], strides = [1, 1]} : vector<8x128xf32> to vector<8x32xf32>
    %21 = arith.mulf %18, %2 : vector<8x32xf32>
    %22 = arith.mulf %17, %19 : vector<8x32xf32>
    %23 = arith.addf %21, %22 : vector<8x32xf32>
    %24 = math.tanh %23 : vector<8x32xf32>
    %25 = arith.mulf %20, %24 : vector<8x32xf32>
    %cst_11 = arith.constant 0.000000e+00 : f32
    %26 = vector.broadcast %cst_11 : f32 to vector<8x32xf32>
    %cst_12 = arith.constant 0.000000e+00 : f32
    %27 = vector.broadcast %cst_12 : f32 to vector<8x32xf32>
    %c0_13 = arith.constant 0 : index
    %c0_14 = arith.constant 0 : index
    %28 = vector.load %arg4[%c0_13, %c0_14] : memref<32x128xf32, #tpu.memory_space<vmem>>, vector<32x128xf32>
    %cst_15 = arith.constant dense<0.000000e+00> : vector<8x128xf32>
    %29 = tpu.matmul %25, %28, %cst_15 {dimension_numbers = #tpu.dot_dimension_numbers<[1], [0], [0], [1], [0, 0, 1, 1], [], []>} : vector<8x32xf32>, vector<32x128xf32>, vector<8x128xf32> -> vector<8x128xf32>
    %c0_16 = arith.constant 0 : index
    %c0_17 = arith.constant 0 : index
    %30 = vector.load %arg5[%c0_16, %c0_17] : memref<32x128xf32, #tpu.memory_space<vmem>>, vector<32x128xf32>
    %cst_18 = arith.constant dense<0.000000e+00> : vector<8x128xf32>
    %31 = tpu.matmul %26, %30, %cst_18 {dimension_numbers = #tpu.dot_dimension_numbers<[1], [0], [0], [1], [0, 0, 1, 1], [], []>} : vector<8x32xf32>, vector<32x128xf32>, vector<8x128xf32> -> vector<8x128xf32>
    %32 = arith.addf %29, %31 : vector<8x128xf32>
    %c0_19 = arith.constant 0 : index
    %c0_20 = arith.constant 0 : index
    %33 = vector.load %arg6[%c0_19, %c0_20] : memref<1x128xf32, #tpu.memory_space<vmem>>, vector<1x128xf32>
    %34 = vector.broadcast %33 : vector<1x128xf32> to vector<8x128xf32>
    %35 = arith.addf %32, %34 : vector<8x128xf32>
    %36 = arith.negf %35 : vector<8x128xf32>
    %37 = math.exp %36 : vector<8x128xf32>
    %cst_21 = arith.constant 1.000000e+00 : f32
    %38 = vector.broadcast %cst_21 : f32 to vector<8x128xf32>
    %39 = arith.addf %38, %37 : vector<8x128xf32>
    %40 = arith.divf %38, %39 : vector<8x128xf32>
    %41 = math.tanh %35 : vector<8x128xf32>
    %42 = vector.extract_strided_slice %40 {offsets = [0, 0], sizes = [8, 32], strides = [1, 1]} : vector<8x128xf32> to vector<8x32xf32>
    %43 = vector.extract_strided_slice %40 {offsets = [0, 32], sizes = [8, 32], strides = [1, 1]} : vector<8x128xf32> to vector<8x32xf32>
    %44 = vector.extract_strided_slice %41 {offsets = [0, 64], sizes = [8, 32], strides = [1, 1]} : vector<8x128xf32> to vector<8x32xf32>
    %45 = vector.extract_strided_slice %40 {offsets = [0, 96], sizes = [8, 32], strides = [1, 1]} : vector<8x128xf32> to vector<8x32xf32>
    %46 = arith.mulf %43, %27 : vector<8x32xf32>
    %47 = arith.mulf %42, %44 : vector<8x32xf32>
    %48 = arith.addf %46, %47 : vector<8x32xf32>
    %49 = math.tanh %48 : vector<8x32xf32>
    %50 = arith.mulf %45, %49 : vector<8x32xf32>
    %cst_22 = arith.constant 0.000000e+00 : f32
    %51 = vector.broadcast %cst_22 : f32 to vector<8x32xf32>
    %cst_23 = arith.constant 0.000000e+00 : f32
    %52 = vector.broadcast %cst_23 : f32 to vector<8x32xf32>
    %c0_24 = arith.constant 0 : index
    %c0_25 = arith.constant 0 : index
    %53 = vector.load %arg7[%c0_24, %c0_25] : memref<32x128xf32, #tpu.memory_space<vmem>>, vector<32x128xf32>
    %cst_26 = arith.constant dense<0.000000e+00> : vector<8x128xf32>
    %54 = tpu.matmul %50, %53, %cst_26 {dimension_numbers = #tpu.dot_dimension_numbers<[1], [0], [0], [1], [0, 0, 1, 1], [], []>} : vector<8x32xf32>, vector<32x128xf32>, vector<8x128xf32> -> vector<8x128xf32>
    %c0_27 = arith.constant 0 : index
    %c0_28 = arith.constant 0 : index
    %55 = vector.load %arg8[%c0_27, %c0_28] : memref<32x128xf32, #tpu.memory_space<vmem>>, vector<32x128xf32>
    %cst_29 = arith.constant dense<0.000000e+00> : vector<8x128xf32>
    %56 = tpu.matmul %51, %55, %cst_29 {dimension_numbers = #tpu.dot_dimension_numbers<[1], [0], [0], [1], [0, 0, 1, 1], [], []>} : vector<8x32xf32>, vector<32x128xf32>, vector<8x128xf32> -> vector<8x128xf32>
    %57 = arith.addf %54, %56 : vector<8x128xf32>
    %c0_30 = arith.constant 0 : index
    %c0_31 = arith.constant 0 : index
    %58 = vector.load %arg9[%c0_30, %c0_31] : memref<1x128xf32, #tpu.memory_space<vmem>>, vector<1x128xf32>
    %59 = vector.broadcast %58 : vector<1x128xf32> to vector<8x128xf32>
    %60 = arith.addf %57, %59 : vector<8x128xf32>
    %61 = arith.negf %60 : vector<8x128xf32>
    %62 = math.exp %61 : vector<8x128xf32>
    %cst_32 = arith.constant 1.000000e+00 : f32
    %63 = vector.broadcast %cst_32 : f32 to vector<8x128xf32>
    %64 = arith.addf %63, %62 : vector<8x128xf32>
    %65 = arith.divf %63, %64 : vector<8x128xf32>
    %66 = math.tanh %60 : vector<8x128xf32>
    %67 = vector.extract_strided_slice %65 {offsets = [0, 0], sizes = [8, 32], strides = [1, 1]} : vector<8x128xf32> to vector<8x32xf32>
    %68 = vector.extract_strided_slice %65 {offsets = [0, 32], sizes = [8, 32], strides = [1, 1]} : vector<8x128xf32> to vector<8x32xf32>
    %69 = vector.extract_strided_slice %66 {offsets = [0, 64], sizes = [8, 32], strides = [1, 1]} : vector<8x128xf32> to vector<8x32xf32>
    %70 = vector.extract_strided_slice %65 {offsets = [0, 96], sizes = [8, 32], strides = [1, 1]} : vector<8x128xf32> to vector<8x32xf32>
    %71 = arith.mulf %68, %52 : vector<8x32xf32>
    %72 = arith.mulf %67, %69 : vector<8x32xf32>
    %73 = arith.addf %71, %72 : vector<8x32xf32>
    %74 = math.tanh %73 : vector<8x32xf32>
    %75 = arith.mulf %70, %74 : vector<8x32xf32>
    %cst_33 = arith.constant 0.000000e+00 : f32
    %76 = vector.broadcast %cst_33 : f32 to vector<8x32xf32>
    %cst_34 = arith.constant 0.000000e+00 : f32
    %77 = vector.broadcast %cst_34 : f32 to vector<8x32xf32>
    %c0_35 = arith.constant 0 : index
    %c0_36 = arith.constant 0 : index
    %78 = vector.load %arg10[%c0_35, %c0_36] : memref<32x128xf32, #tpu.memory_space<vmem>>, vector<32x128xf32>
    %cst_37 = arith.constant dense<0.000000e+00> : vector<8x128xf32>
    %79 = tpu.matmul %75, %78, %cst_37 {dimension_numbers = #tpu.dot_dimension_numbers<[1], [0], [0], [1], [0, 0, 1, 1], [], []>} : vector<8x32xf32>, vector<32x128xf32>, vector<8x128xf32> -> vector<8x128xf32>
    %c0_38 = arith.constant 0 : index
    %c0_39 = arith.constant 0 : index
    %80 = vector.load %arg11[%c0_38, %c0_39] : memref<32x128xf32, #tpu.memory_space<vmem>>, vector<32x128xf32>
    %cst_40 = arith.constant dense<0.000000e+00> : vector<8x128xf32>
    %81 = tpu.matmul %76, %80, %cst_40 {dimension_numbers = #tpu.dot_dimension_numbers<[1], [0], [0], [1], [0, 0, 1, 1], [], []>} : vector<8x32xf32>, vector<32x128xf32>, vector<8x128xf32> -> vector<8x128xf32>
    %82 = arith.addf %79, %81 : vector<8x128xf32>
    %c0_41 = arith.constant 0 : index
    %c0_42 = arith.constant 0 : index
    %83 = vector.load %arg12[%c0_41, %c0_42] : memref<1x128xf32, #tpu.memory_space<vmem>>, vector<1x128xf32>
    %84 = vector.broadcast %83 : vector<1x128xf32> to vector<8x128xf32>
    %85 = arith.addf %82, %84 : vector<8x128xf32>
    %86 = arith.negf %85 : vector<8x128xf32>
    %87 = math.exp %86 : vector<8x128xf32>
    %cst_43 = arith.constant 1.000000e+00 : f32
    %88 = vector.broadcast %cst_43 : f32 to vector<8x128xf32>
    %89 = arith.addf %88, %87 : vector<8x128xf32>
    %90 = arith.divf %88, %89 : vector<8x128xf32>
    %91 = math.tanh %85 : vector<8x128xf32>
    %92 = vector.extract_strided_slice %90 {offsets = [0, 0], sizes = [8, 32], strides = [1, 1]} : vector<8x128xf32> to vector<8x32xf32>
    %93 = vector.extract_strided_slice %90 {offsets = [0, 32], sizes = [8, 32], strides = [1, 1]} : vector<8x128xf32> to vector<8x32xf32>
    %94 = vector.extract_strided_slice %91 {offsets = [0, 64], sizes = [8, 32], strides = [1, 1]} : vector<8x128xf32> to vector<8x32xf32>
    %95 = vector.extract_strided_slice %90 {offsets = [0, 96], sizes = [8, 32], strides = [1, 1]} : vector<8x128xf32> to vector<8x32xf32>
    %96 = arith.mulf %93, %77 : vector<8x32xf32>
    %97 = arith.mulf %92, %94 : vector<8x32xf32>
    %98 = arith.addf %96, %97 : vector<8x32xf32>
    %99 = math.tanh %98 : vector<8x32xf32>
    %100 = arith.mulf %95, %99 : vector<8x32xf32>
    %cst_44 = arith.constant 0.000000e+00 : f32
    %101 = vector.broadcast %cst_44 : f32 to vector<8x32xf32>
    %102 = arith.maximumf %100, %101 : vector<8x32xf32>
    %c0_45 = arith.constant 0 : index
    %c0_46 = arith.constant 0 : index
    %103 = vector.load %arg13[%c0_45, %c0_46] : memref<32x2xf32, #tpu.memory_space<vmem>>, vector<32x2xf32>
    %cst_47 = arith.constant dense<0.000000e+00> : vector<8x2xf32>
    %104 = tpu.matmul %102, %103, %cst_47 {dimension_numbers = #tpu.dot_dimension_numbers<[1], [0], [0], [1], [0, 0, 1, 1], [], []>} : vector<8x32xf32>, vector<32x2xf32>, vector<8x2xf32> -> vector<8x2xf32>
    %c0_48 = arith.constant 0 : index
    %c0_49 = arith.constant 0 : index
    %105 = vector.load %arg14[%c0_48, %c0_49] : memref<8x2xf32, #tpu.memory_space<vmem>>, vector<8x2xf32>
    tpu.vector_store %arg14[%c0_48, %c0_49], %104 {strides = array<i32>} : memref<8x2xf32, #tpu.memory_space<vmem>>, vector<8x2xf32>,
    return
  }
}

</mosaic_0001>

<llo_original>
// kernel: tpu_custom_call.1
$region0: #{tpu_custom_call.1}
  #allocation0 [shape = 'u32[]', space=smem, size = 0x4, offset = 0x4, fixed_abs, tag = 'smem constant byte address 0x4 - core index']
  #allocation1 [shape = 'u32[144,128]{1,0:T(1,128)}', space=vmem, size = 0x12000, scoped, tag = 'internal scratch']
  %s0 = inlined_call_operand.hbm [shape: f32[8,128], index: 0, kind: input, shape index: {}]
  %s1 = inlined_call_operand.hbm [shape: f32[128,128], index: 1, kind: input, shape index: {}]
  %s2 = inlined_call_operand.vmem [shape: f32[32,128], index: 2, kind: input, shape index: {}]
  %s3 = inlined_call_operand.hbm [shape: f32[1,128], index: 3, kind: input, shape index: {}]
  %s4 = inlined_call_operand.hbm [shape: f32[32,128], index: 4, kind: input, shape index: {}]
  %s5 = inlined_call_operand.hbm [shape: f32[32,128], index: 5, kind: input, shape index: {}]
  %s6 = inlined_call_operand.hbm [shape: f32[1,128], index: 6, kind: input, shape index: {}]
  %s7 = inlined_call_operand.hbm [shape: f32[32,128], index: 7, kind: input, shape index: {}]
  %s8 = inlined_call_operand.vmem [shape: f32[32,128], index: 8, kind: input, shape index: {}]
  %s9 = inlined_call_operand.vmem [shape: f32[1,128], index: 9, kind: input, shape index: {}]
  %s10 = inlined_call_operand.hbm [shape: f32[32,128], index: 10, kind: input, shape index: {}]
  %s11 = inlined_call_operand.hbm [shape: f32[32,128], index: 11, kind: input, shape index: {}]
  %s12 = inlined_call_operand.vmem [shape: f32[1,128], index: 12, kind: input, shape index: {}]
  %s13 = inlined_call_operand.vmem [shape: f32[32,2], index: 13, kind: input, shape index: {}]
  %s14 = inlined_call_operand.vmem [shape: f32[8,2], index: 14, kind: output, shape index: {}]
  %s15 = sld [smem:[#allocation0]]
  $region102: #{tpu_custom_call.1} parent=0
    _
  %s17 = ssub.s32 1, %s15
  %s18 = scalar_select 0, %s17, %s15
  $region1: #{tpu_custom_call.1} parent=0
    #allocation2 [shape = 'u8[4096]{0}', space=vmem, size = 0x1000, scoped, tag = 'input window, operand 0, single buffered']
    #allocation3 [shape = 's32[1]{0}', space=sflag, size = 0x4, scoped, tag = 'scoped memory for tpu_custom_call.1']
    #allocation4 [shape = 'u8[65536]{0}', space=vmem, size = 0x10000, scoped, tag = 'input window, operand 1, single buffered']
    #allocation5 [shape = 's32[1]{0}', space=sflag, size = 0x4, scoped, tag = 'scoped memory for tpu_custom_call.1']
    #allocation6 [shape = 'u8[512]{0}', space=vmem, size = 0x400, scoped, tag = 'input window, operand 3, single buffered']
    #allocation7 [shape = 'u8[16384]{0}', space=vmem, size = 0x4000, scoped, tag = 'input window, operand 4, single buffered']
    #allocation8 [shape = 's32[1]{0}', space=sflag, size = 0x4, scoped, tag = 'scoped memory for tpu_custom_call.1']
    #allocation9 [shape = 'u8[16384]{0}', space=vmem, size = 0x4000, scoped, tag = 'input window, operand 5, single buffered']
    #allocation10 [shape = 'u8[512]{0}', space=vmem, size = 0x400, scoped, tag = 'input window, operand 6, single buffered']
    #allocation11 [shape = 's32[1]{0}', space=sflag, size = 0x4, scoped, tag = 'scoped memory for tpu_custom_call.1']
    #allocation12 [shape = 'u8[16384]{0}', space=vmem, size = 0x4000, scoped, tag = 'input window, operand 7, single buffered']
    #allocation13 [shape = 'u8[16384]{0}', space=vmem, size = 0x4000, scoped, tag = 'input window, operand 10, single buffered']
    #allocation14 [shape = 's32[1]{0}', space=sflag, size = 0x4, scoped, tag = 'scoped memory for tpu_custom_call.1']
    #allocation15 [shape = 'u8[16384]{0}', space=vmem, size = 0x4000, scoped, tag = 'input window, operand 11, single buffered']
    %19 = vsyncpa [#allocation3], 0
    %20 = vsyncpa [#allocation5], 0
    %21 = vsyncpa [#allocation8], 0
    %22 = vsyncpa [#allocation11], 0
    %23 = vsyncpa [#allocation14], 0
    // Predicated region
    $region2: #{tpu_custom_call.1} parent=1 // pred_check
      _
    $region3: #{tpu_custom_call.1} parent=1 // pred_check_branch
      %25 = sbr.rel (0) target = $region5
    $region4: #{tpu_custom_call.1} parent=1 // pred_region
      %s27 = ssub.s32 128, 128
      %28 = vsyncadd [#allocation3], %s27
      %s30 = sshll.u32 [#allocation2], 4
      %s31 = int_to_ptr.vmem [resolvable:$true] %s30
      %33 = dma.hbm_to_vmem [thread:$0]  %s0, 128, %s31, [#allocation3]
    $region5: #{tpu_custom_call.1} parent=1 // pred_fallthru
      _
    // Predicated region
    $region6: #{tpu_custom_call.1} parent=1 // pred_check
      _
    $region7: #{tpu_custom_call.1} parent=1 // pred_check_branch
      %35 = sbr.rel (0) target = $region9
    $region8: #{tpu_custom_call.1} parent=1 // pred_region
      %s37 = ssub.s32 2048, 2048
      %38 = vsyncadd [#allocation5], %s37
      %s39 = sshll.u32 [#allocation4], 4
      %s40 = int_to_ptr.vmem [resolvable:$true] %s39
      %45 = dma.hbm_to_vmem [thread:$0]  %s1, 2048, %s40, [#allocation5], 128, 128, 8
    $region9: #{tpu_custom_call.1} parent=1 // pred_fallthru
      _
    // Predicated region
    $region10: #{tpu_custom_call.1} parent=1 // pred_check
      _
    $region11: #{tpu_custom_call.1} parent=1 // pred_check_branch
      %47 = sbr.rel (0) target = $region13
    $region12: #{tpu_custom_call.1} parent=1 // pred_region
      _
    $region13: #{tpu_custom_call.1} parent=1 // pred_fallthru
      _
    // Predicated region
    $region14: #{tpu_custom_call.1} parent=1 // pred_check
      _
    $region15: #{tpu_custom_call.1} parent=1 // pred_check_branch
      %49 = sbr.rel (0) target = $region17
    $region16: #{tpu_custom_call.1} parent=1 // pred_region
      %s51 = ssub.s32 16, 16
      %52 = vsyncadd [#allocation5], %s51
      %s54 = sshll.u32 [#allocation6], 4
      %s55 = int_to_ptr.vmem [resolvable:$true] %s54
      %57 = dma.hbm_to_vmem [thread:$0]  %s3, 16, %s55, [#allocation5]
    $region17: #{tpu_custom_call.1} parent=1 // pred_fallthru
      _
    // Predicated region
    $region18: #{tpu_custom_call.1} parent=1 // pred_check
      _
    $region19: #{tpu_custom_call.1} parent=1 // pred_check_branch
      %59 = sbr.rel (0) target = $region21
    $region20: #{tpu_custom_call.1} parent=1 // pred_region
      %s61 = ssub.s32 512, 512
      %62 = vsyncadd [#allocation8], %s61
      %s63 = sshll.u32 [#allocation7], 4
      %s64 = int_to_ptr.vmem [resolvable:$true] %s63
      %69 = dma.hbm_to_vmem [thread:$0]  %s4, 512, %s64, [#allocation8], 128, 128, 8
    $region21: #{tpu_custom_call.1} parent=1 // pred_fallthru
      _
    // Predicated region
    $region22: #{tpu_custom_call.1} parent=1 // pred_check
      _
    $region23: #{tpu_custom_call.1} parent=1 // pred_check_branch
      %71 = sbr.rel (0) target = $region25
    $region24: #{tpu_custom_call.1} parent=1 // pred_region
      %s73 = ssub.s32 512, 512
      %74 = vsyncadd [#allocation8], %s73
      %s75 = sshll.u32 [#allocation9], 4
      %s76 = int_to_ptr.vmem [resolvable:$true] %s75
      %81 = dma.hbm_to_vmem [thread:$0]  %s5, 512, %s76, [#allocation8], 128, 128, 8
    $region25: #{tpu_custom_call.1} parent=1 // pred_fallthru
      _
    // Predicated region
    $region26: #{tpu_custom_call.1} parent=1 // pred_check
      _
    $region27: #{tpu_custom_call.1} parent=1 // pred_check_branch
      %83 = sbr.rel (0) target = $region29
    $region28: #{tpu_custom_call.1} parent=1 // pred_region
      %s85 = ssub.s32 16, 16
      %86 = vsyncadd [#allocation11], %s85
      %s88 = sshll.u32 [#allocation10], 4
      %s89 = int_to_ptr.vmem [resolvable:$true] %s88
      %91 = dma.hbm_to_vmem [thread:$0]  %s6, 16, %s89, [#allocation11]
    $region29: #{tpu_custom_call.1} parent=1 // pred_fallthru
      _
    // Predicated region
    $region30: #{tpu_custom_call.1} parent=1 // pred_check
      _
    $region31: #{tpu_custom_call.1} parent=1 // pred_check_branch
      %93 = sbr.rel (0) target = $region33
    $region32: #{tpu_custom_call.1} parent=1 // pred_region
      %s95 = ssub.s32 512, 512
      %96 = vsyncadd [#allocation11], %s95
      %s97 = sshll.u32 [#allocation12], 4
      %s98 = int_to_ptr.vmem [resolvable:$true] %s97
      %103 = dma.hbm_to_vmem [thread:$0]  %s7, 512, %s98, [#allocation11], 128, 128, 8
    $region33: #{tpu_custom_call.1} parent=1 // pred_fallthru
      _
    // Predicated region
    $region34: #{tpu_custom_call.1} parent=1 // pred_check
      _
    $region35: #{tpu_custom_call.1} parent=1 // pred_check_branch
      %105 = sbr.rel (0) target = $region37
    $region36: #{tpu_custom_call.1} parent=1 // pred_region
      _
    $region37: #{tpu_custom_call.1} parent=1 // pred_fallthru
      _
    // Predicated region
    $region38: #{tpu_custom_call.1} parent=1 // pred_check
      _
    $region39: #{tpu_custom_call.1} parent=1 // pred_check_branch
      %107 = sbr.rel (0) target = $region41
    $region40: #{tpu_custom_call.1} parent=1 // pred_region
      _
    $region41: #{tpu_custom_call.1} parent=1 // pred_fallthru
      _
    // Predicated region
    $region42: #{tpu_custom_call.1} parent=1 // pred_check
      _
    $region43: #{tpu_custom_call.1} parent=1 // pred_check_branch
      %109 = sbr.rel (0) target = $region45
    $region44: #{tpu_custom_call.1} parent=1 // pred_region
      %s111 = ssub.s32 512, 512
      %112 = vsyncadd [#allocation14], %s111
      %s113 = sshll.u32 [#allocation13], 4
      %s114 = int_to_ptr.vmem [resolvable:$true] %s113
      %119 = dma.hbm_to_vmem [thread:$0]  %s10, 512, %s114, [#allocation14], 128, 128, 8
    $region45: #{tpu_custom_call.1} parent=1 // pred_fallthru
      _
    // Predicated region
    $region46: #{tpu_custom_call.1} parent=1 // pred_check
      _
    $region47: #{tpu_custom_call.1} parent=1 // pred_check_branch
      %121 = sbr.rel (0) target = $region49
    $region48: #{tpu_custom_call.1} parent=1 // pred_region
      %s123 = ssub.s32 512, 512
      %124 = vsyncadd [#allocation14], %s123
      %s125 = sshll.u32 [#allocation15], 4
      %s126 = int_to_ptr.vmem [resolvable:$true] %s125
      %131 = dma.hbm_to_vmem [thread:$0]  %s11, 512, %s126, [#allocation14], 128, 128, 8
    $region49: #{tpu_custom_call.1} parent=1 // pred_fallthru
      _
    // Predicated region
    $region50: #{tpu_custom_call.1} parent=1 // pred_check
      _
    $region51: #{tpu_custom_call.1} parent=1 // pred_check_branch
      %133 = sbr.rel (0) target = $region53
    $region52: #{tpu_custom_call.1} parent=1 // pred_region
      _
    $region53: #{tpu_custom_call.1} parent=1 // pred_fallthru
      _
    // Predicated region
    $region54: #{tpu_custom_call.1} parent=1 // pred_check
      _
    $region55: #{tpu_custom_call.1} parent=1 // pred_check_branch
      %135 = sbr.rel (0) target = $region57
    $region56: #{tpu_custom_call.1} parent=1 // pred_region
      _
    $region57: #{tpu_custom_call.1} parent=1 // pred_fallthru
      _
    // Predicated region
    $region58: #{tpu_custom_call.1} parent=1 // pred_check
      _
    $region59: #{tpu_custom_call.1} parent=1 // pred_check_branch
      %137 = sbr.rel (0) target = $region61
    $region60: #{tpu_custom_call.1} parent=1 // pred_region
      %138 = dma.done [#allocation3], 128
    $region61: #{tpu_custom_call.1} parent=1 // pred_fallthru
      _
    // Predicated region
    $region62: #{tpu_custom_call.1} parent=1 // pred_check
      _
    $region63: #{tpu_custom_call.1} parent=1 // pred_check_branch
      %140 = sbr.rel (0) target = $region65
    $region64: #{tpu_custom_call.1} parent=1 // pred_region
      %141 = dma.done [#allocation5], 2048
    $region65: #{tpu_custom_call.1} parent=1 // pred_fallthru
      _
    // Predicated region
    $region66: #{tpu_custom_call.1} parent=1 // pred_check
      _
    $region67: #{tpu_custom_call.1} parent=1 // pred_check_branch
      %143 = sbr.rel (0) target = $region69
    $region68: #{tpu_custom_call.1} parent=1 // pred_region
      %144 = dma.done [#allocation5], 16
    $region69: #{tpu_custom_call.1} parent=1 // pred_fallthru
      _
    // Predicated region
    $region70: #{tpu_custom_call.1} parent=1 // pred_check
      _
    $region71: #{tpu_custom_call.1} parent=1 // pred_check_branch
      %146 = sbr.rel (0) target = $region73
    $region72: #{tpu_custom_call.1} parent=1 // pred_region
      %147 = dma.done [#allocation8], 512
    $region73: #{tpu_custom_call.1} parent=1 // pred_fallthru
      _
    // Predicated region
    $region74: #{tpu_custom_call.1} parent=1 // pred_check
      _
    $region75: #{tpu_custom_call.1} parent=1 // pred_check_branch
      %149 = sbr.rel (0) target = $region77
    $region76: #{tpu_custom_call.1} parent=1 // pred_region
      %150 = dma.done [#allocation8], 512
    $region77: #{tpu_custom_call.1} parent=1 // pred_fallthru
      _
    // Predicated region
    $region78: #{tpu_custom_call.1} parent=1 // pred_check
      _
    $region79: #{tpu_custom_call.1} parent=1 // pred_check_branch
      %152 = sbr.rel (0) target = $region81
    $region80: #{tpu_custom_call.1} parent=1 // pred_region
      %153 = dma.done [#allocation11], 16
    $region81: #{tpu_custom_call.1} parent=1 // pred_fallthru
      _
    // Predicated region
    $region82: #{tpu_custom_call.1} parent=1 // pred_check
      _
    $region83: #{tpu_custom_call.1} parent=1 // pred_check_branch
      %155 = sbr.rel (0) target = $region85
    $region84: #{tpu_custom_call.1} parent=1 // pred_region
      %156 = dma.done [#allocation11], 512
    $region85: #{tpu_custom_call.1} parent=1 // pred_fallthru
      _
    // Predicated region
    $region86: #{tpu_custom_call.1} parent=1 // pred_check
      _
    $region87: #{tpu_custom_call.1} parent=1 // pred_check_branch
      %158 = sbr.rel (0) target = $region89
    $region88: #{tpu_custom_call.1} parent=1 // pred_region
      %159 = dma.done [#allocation14], 512
    $region89: #{tpu_custom_call.1} parent=1 // pred_fallthru
      _
    // Predicated region
    $region90: #{tpu_custom_call.1} parent=1 // pred_check
      _
    $region91: #{tpu_custom_call.1} parent=1 // pred_check_branch
      %161 = sbr.rel (0) target = $region93
    $region92: #{tpu_custom_call.1} parent=1 // pred_region
      %162 = dma.done [#allocation14], 512
    $region93: #{tpu_custom_call.1} parent=1 // pred_fallthru
      _
    %v163 = vld [vmem:[#allocation2] sm:$0xff]
    %v164 = vld [vmem:[#allocation4] sm:$0xff]
    %v165 = vld [vmem:[#allocation4 + $0x8] sm:$0xff]
    %v166 = vld [vmem:[#allocation4 + $0x10] sm:$0xff]
    %v167 = vld [vmem:[#allocation4 + $0x18] sm:$0xff]
    %v168 = vld [vmem:[#allocation4 + $0x20] sm:$0xff]
    %v169 = vld [vmem:[#allocation4 + $0x28] sm:$0xff]
    %v170 = vld [vmem:[#allocation4 + $0x30] sm:$0xff]
    %v171 = vld [vmem:[#allocation4 + $0x38] sm:$0xff]
    %v172 = vld [vmem:[#allocation4 + $0x40] sm:$0xff]
    %v173 = vld [vmem:[#allocation4 + $0x48] sm:$0xff]
    %v174 = vld [vmem:[#allocation4 + $0x50] sm:$0xff]
    %v175 = vld [vmem:[#allocation4 + $0x58] sm:$0xff]
    %v176 = vld [vmem:[#allocation4 + $0x60] sm:$0xff]
    %v177 = vld [vmem:[#allocation4 + $0x68] sm:$0xff]
    %v178 = vld [vmem:[#allocation4 + $0x70] sm:$0xff]
    %v179 = vld [vmem:[#allocation4 + $0x78] sm:$0xff]
    %v180 = vld [vmem:[%s2] sm:$0xff]
    %v181 = vld [vmem:[%s2 + $0x8] sm:$0xff]
    %v182 = vld [vmem:[%s2 + $0x10] sm:$0xff]
    %v183 = vld [vmem:[%s2 + $0x18] sm:$0xff]
    %vm184 = vcmask 261120
    %v186 = vsel %vm184, 0.0, 0
    %188 = vmatprep.subr.mxu0 0.0
    %189 = vmatpush1.msra.mxu0 %v180
    %190 = vmatprep.subr.mxu0 0.0
    %191 = vmatpush1.msra.mxu0 %v181
    %192 = vmatprep.subr.mxu0 0.0
    %193 = vmatpush1.msra.mxu0 %v182
    %194 = vmatprep.subr.mxu0 0.0
    %195 = vmatpush1.msra.mxu0 %v183
    %196 = vmatprep.subr.mxu0 0.0
    %197 = vmatpush1.msra.mxu0 0.0
    %198 = vmatprep.subr.mxu0 0.0
    %199 = vmatpush1.msra.mxu0 0.0
    %200 = vmatprep.subr.mxu0 0.0
    %201 = vmatpush1.msra.mxu0 0.0
    %202 = vmatprep.subr.mxu0 0.0
    %203 = vmatpush1.msra.mxu0 0.0
    %204 = vmatprep.subr.mxu0 0.0
    %205 = vmatpush1.msra.mxu0 0.0
    %206 = vmatprep.subr.mxu0 0.0
    %207 = vmatpush1.msra.mxu0 0.0
    %208 = vmatprep.subr.mxu0 0.0
    %209 = vmatpush1.msra.mxu0 0.0
    %210 = vmatprep.subr.mxu0 0.0
    %211 = vmatpush1.msra.mxu0 0.0
    %212 = vmatprep.subr.mxu0 0.0
    %213 = vmatpush1.msra.mxu0 0.0
    %214 = vmatprep.subr.mxu0 0.0
    %215 = vmatpush1.msra.mxu0 0.0
    %216 = vmatprep.subr.mxu0 0.0
    %217 = vmatpush1.msra.mxu0 0.0
    %218 = vmatprep.subr.mxu0 0.0
    %219 = vmatpush1.msra.mxu0 0.0
    %220 = vmatprep.subr.mxu0 0.0
    %221 = vmatpush1.msra.mxu0 0.0
    %222 = vmatprep.subr.mxu0 0.0
    %223 = vmatpush1.msra.mxu0 0.0
    %224 = vmatprep.subr.mxu0 0.0
    %225 = vmatpush1.msra.mxu0 0.0
    %226 = vmatprep.subr.mxu0 0.0
    %227 = vmatpush1.msra.mxu0 0.0
    %228 = vmatprep.subr.mxu0 0.0
    %229 = vmatpush1.msra.mxu0 0.0
    %230 = vmatprep.subr.mxu0 0.0
    %231 = vmatpush1.msra.mxu0 0.0
    %232 = vmatprep.subr.mxu0 0.0
    %233 = vmatpush1.msra.mxu0 0.0
    %234 = vmatprep.subr.mxu0 0.0
    %235 = vmatpush1.msra.mxu0 0.0
    %236 = vmatprep.subr.mxu0 0.0
    %237 = vmatpush1.msra.mxu0 0.0
    %238 = vmatprep.subr.mxu0 0.0
    %239 = vmatpush1.msra.mxu0 0.0
    %240 = vmatprep.subr.mxu0 0.0
    %241 = vmatpush1.msra.mxu0 0.0
    %242 = vmatprep.subr.mxu0 0.0
    %243 = vmatpush1.msra.mxu0 0.0
    %244 = vmatprep.subr.mxu0 0.0
    %245 = vmatpush1.msra.mxu0 0.0
    %246 = vmatprep.subr.mxu0 0.0
    %247 = vmatpush1.msra.mxu0 0.0
    %248 = vmatprep.subr.mxu0 0.0
    %249 = vmatpush1.msra.mxu0 0.0
    %250 = vmatprep.subr.mxu0 0.0
    %251 = vmatpush1.msra.mxu0 0.0
    %252 = vmatprep.mubr.f32.mxu0 0.0
    %253 = vmatmul.mubr.f32.gmra.mrb[0].mxu0 %v186
    %v254 = vpop.f32.mrb[0].mxu0
    %v255 = vadd.f32 0.0, %v254
    %v256 = vpop.f32.mrb[0].mxu0
    %257 = vdwg.mxu0
    %258 = vmatprep.subr.mxu0 0.0
    %259 = vmatpush1.msra.mxu0 %v164
    %260 = vmatprep.subr.mxu0 0.0
    %261 = vmatpush1.msra.mxu0 %v165
    %262 = vmatprep.subr.mxu0 0.0
    %263 = vmatpush1.msra.mxu0 %v166
    %264 = vmatprep.subr.mxu0 0.0
    %265 = vmatpush1.msra.mxu0 %v167
    %266 = vmatprep.subr.mxu0 0.0
    %267 = vmatpush1.msra.mxu0 %v168
    %268 = vmatprep.subr.mxu0 0.0
    %269 = vmatpush1.msra.mxu0 %v169
    %270 = vmatprep.subr.mxu0 0.0
    %271 = vmatpush1.msra.mxu0 %v170
    %272 = vmatprep.subr.mxu0 0.0
    %273 = vmatpush1.msra.mxu0 %v171
    %274 = vmatprep.subr.mxu0 0.0
    %275 = vmatpush1.msra.mxu0 %v172
    %276 = vmatprep.subr.mxu0 0.0
    %277 = vmatpush1.msra.mxu0 %v173
    %278 = vmatprep.subr.mxu0 0.0
    %279 = vmatpush1.msra.mxu0 %v174
    %280 = vmatprep.subr.mxu0 0.0
    %281 = vmatpush1.msra.mxu0 %v175
    %282 = vmatprep.subr.mxu0 0.0
    %283 = vmatpush1.msra.mxu0 %v176
    %284 = vmatprep.subr.mxu0 0.0
    %285 = vmatpush1.msra.mxu0 %v177
    %286 = vmatprep.subr.mxu0 0.0
    %287 = vmatpush1.msra.mxu0 %v178
    %288 = vmatprep.subr.mxu0 0.0
    %289 = vmatpush1.msra.mxu0 %v179
    %290 = vmatprep.subr.mxu0 0.0
    %291 = vmatpush1.msra.mxu0 0.0
    %292 = vmatprep.subr.mxu0 0.0
    %293 = vmatpush1.msra.mxu0 0.0
    %294 = vmatprep.subr.mxu0 0.0
    %295 = vmatpush1.msra.mxu0 0.0
    %296 = vmatprep.subr.mxu0 0.0
    %297 = vmatpush1.msra.mxu0 0.0
    %298 = vmatprep.subr.mxu0 0.0
    %299 = vmatpush1.msra.mxu0 0.0
    %300 = vmatprep.subr.mxu0 0.0
    %301 = vmatpush1.msra.mxu0 0.0
    %302 = vmatprep.subr.mxu0 0.0
    %303 = vmatpush1.msra.mxu0 0.0
    %304 = vmatprep.subr.mxu0 0.0
    %305 = vmatpush1.msra.mxu0 0.0
    %306 = vmatprep.subr.mxu0 0.0
    %307 = vmatpush1.msra.mxu0 0.0
    %308 = vmatprep.subr.mxu0 0.0
    %309 = vmatpush1.msra.mxu0 0.0
    %310 = vmatprep.subr.mxu0 0.0
    %311 = vmatpush1.msra.mxu0 0.0
    %312 = vmatprep.subr.mxu0 0.0
    %313 = vmatpush1.msra.mxu0 0.0
    %314 = vmatprep.subr.mxu0 0.0
    %315 = vmatpush1.msra.mxu0 0.0
    %316 = vmatprep.subr.mxu0 0.0
    %317 = vmatpush1.msra.mxu0 0.0
    %318 = vmatprep.subr.mxu0 0.0
    %319 = vmatpush1.msra.mxu0 0.0
    %320 = vmatprep.subr.mxu0 0.0
    %321 = vmatpush1.msra.mxu0 0.0
    %322 = vmatprep.mubr.f32.mxu0 0.0
    %323 = vmatmul.mubr.f32.gmra.mrb[0].mxu0 %v163
    %v324 = vpop.f32.mrb[0].mxu0
    %v325 = vadd.f32 %v255, %v324
    %v326 = vpop.f32.mrb[0].mxu0
    %327 = vdwg.mxu0
    %v328 = vld [vmem:[#allocation6] sm:$0x1]
    %v330 = vlaneseq
    %v331 = vshrl.u32 %v330, 7
    %v332 = vsub.s32 0, %v331
    %v333 = vrot.slane %v328, %v332
    %v335 = vadd.f32 %v325, %v333
    %v336 = vxor.u32 %v335, 2147483648
    %v337 = vmul.f32 %v336, 1.442695
    %v338 = vpow.pop %v337
    %v339 = vadd.f32 %v338, 1.0
    %v340 = vrcp.pop %v339
    %v341 = vmul.f32 1.0, %v340
    %v342 = vtanh.pop %v335
    %v343 = vmul.f32 %v341, 0.0
    %345 = vrot.lane.b32.xlu0 %v342, 64
    %v346 = vpop.permute.xlu0 %345
    %v348 = vmul.f32 %v341, %v346
    %350 = vrot.lane.b32.xlu0 %v348, 32
    %v351 = vpop.permute.xlu0 %350
    %v353 = vadd.f32 %v343, %v351
    %v354 = vtanh.pop %v353
    %356 = vrot.lane.b32.xlu0 %v354, 64
    %v357 = vpop.permute.xlu0 %356
    %v359 = vmul.f32 %v341, %v357
    %v360 = vld [vmem:[#allocation7] sm:$0xff]
    %v361 = vld [vmem:[#allocation7 + $0x8] sm:$0xff]
    %v362 = vld [vmem:[#allocation7 + $0x10] sm:$0xff]
    %v363 = vld [vmem:[#allocation7 + $0x18] sm:$0xff]
    %v364 = vld [vmem:[#allocation9] sm:$0xff]
    %v365 = vld [vmem:[#allocation9 + $0x8] sm:$0xff]
    %v366 = vld [vmem:[#allocation9 + $0x10] sm:$0xff]
    %v367 = vld [vmem:[#allocation9 + $0x18] sm:$0xff]
    %368 = vmatprep.subr.mxu0 0.0
    %369 = vmatpush1.msra.mxu0 %v364
    %370 = vmatprep.subr.mxu0 0.0
    %371 = vmatpush1.msra.mxu0 %v365
    %372 = vmatprep.subr.mxu0 0.0
    %373 = vmatpush1.msra.mxu0 %v366
    %374 = vmatprep.subr.mxu0 0.0
    %375 = vmatpush1.msra.mxu0 %v367
    %376 = vmatprep.subr.mxu0 0.0
    %377 = vmatpush1.msra.mxu0 0.0
    %378 = vmatprep.subr.mxu0 0.0
    %379 = vmatpush1.msra.mxu0 0.0
    %380 = vmatprep.subr.mxu0 0.0
    %381 = vmatpush1.msra.mxu0 0.0
    %382 = vmatprep.subr.mxu0 0.0
    %383 = vmatpush1.msra.mxu0 0.0
    %384 = vmatprep.subr.mxu0 0.0
    %385 = vmatpush1.msra.mxu0 0.0
    %386 = vmatprep.subr.mxu0 0.0
    %387 = vmatpush1.msra.mxu0 0.0
    %388 = vmatprep.subr.mxu0 0.0
    %389 = vmatpush1.msra.mxu0 0.0
    %390 = vmatprep.subr.mxu0 0.0
    %391 = vmatpush1.msra.mxu0 0.0
    %392 = vmatprep.subr.mxu0 0.0
    %393 = vmatpush1.msra.mxu0 0.0
    %394 = vmatprep.subr.mxu0 0.0
    %395 = vmatpush1.msra.mxu0 0.0
    %396 = vmatprep.subr.mxu0 0.0
    %397 = vmatpush1.msra.mxu0 0.0
    %398 = vmatprep.subr.mxu0 0.0
    %399 = vmatpush1.msra.mxu0 0.0
    %400 = vmatprep.subr.mxu0 0.0
    %401 = vmatpush1.msra.mxu0 0.0
    %402 = vmatprep.subr.mxu0 0.0
    %403 = vmatpush1.msra.mxu0 0.0
    %404 = vmatprep.subr.mxu0 0.0
    %405 = vmatpush1.msra.mxu0 0.0
    %406 = vmatprep.subr.mxu0 0.0
    %407 = vmatpush1.msra.mxu0 0.0
    %408 = vmatprep.subr.mxu0 0.0
    %409 = vmatpush1.msra.mxu0 0.0
    %410 = vmatprep.subr.mxu0 0.0
    %411 = vmatpush1.msra.mxu0 0.0
    %412 = vmatprep.subr.mxu0 0.0
    %413 = vmatpush1.msra.mxu0 0.0
    %414 = vmatprep.subr.mxu0 0.0
    %415 = vmatpush1.msra.mxu0 0.0
    %416 = vmatprep.subr.mxu0 0.0
    %417 = vmatpush1.msra.mxu0 0.0
    %418 = vmatprep.subr.mxu0 0.0
    %419 = vmatpush1.msra.mxu0 0.0
    %420 = vmatprep.subr.mxu0 0.0
    %421 = vmatpush1.msra.mxu0 0.0
    %422 = vmatprep.subr.mxu0 0.0
    %423 = vmatpush1.msra.mxu0 0.0
    %424 = vmatprep.subr.mxu0 0.0
    %425 = vmatpush1.msra.mxu0 0.0
    %426 = vmatprep.subr.mxu0 0.0
    %427 = vmatpush1.msra.mxu0 0.0
    %428 = vmatprep.subr.mxu0 0.0
    %429 = vmatpush1.msra.mxu0 0.0
    %430 = vmatprep.subr.mxu0 0.0
    %431 = vmatpush1.msra.mxu0 0.0
    %432 = vmatprep.mubr.f32.mxu0 0.0
    %433 = vmatmul.mubr.f32.gmra.mrb[0].mxu0 %v186
    %v434 = vpop.f32.mrb[0].mxu0
    %v435 = vadd.f32 0.0, %v434
    %v436 = vpop.f32.mrb[0].mxu0
    %437 = vdwg.mxu0
    %439 = vrot.lane.b32.xlu0 %v359, 32
    %v440 = vpop.permute.xlu0 %439
    %v441 = vsel %vm184, %v440, 0
    %443 = vmatprep.subr.mxu0 0.0
    %444 = vmatpush1.msra.mxu0 %v360
    %445 = vmatprep.subr.mxu0 0.0
    %446 = vmatpush1.msra.mxu0 %v361
    %447 = vmatprep.subr.mxu0 0.0
    %448 = vmatpush1.msra.mxu0 %v362
    %449 = vmatprep.subr.mxu0 0.0
    %450 = vmatpush1.msra.mxu0 %v363
    %451 = vmatprep.subr.mxu0 0.0
    %452 = vmatpush1.msra.mxu0 0.0
    %453 = vmatprep.subr.mxu0 0.0
    %454 = vmatpush1.msra.mxu0 0.0
    %455 = vmatprep.subr.mxu0 0.0
    %456 = vmatpush1.msra.mxu0 0.0
    %457 = vmatprep.subr.mxu0 0.0
    %458 = vmatpush1.msra.mxu0 0.0
    %459 = vmatprep.subr.mxu0 0.0
    %460 = vmatpush1.msra.mxu0 0.0
    %461 = vmatprep.subr.mxu0 0.0
    %462 = vmatpush1.msra.mxu0 0.0
    %463 = vmatprep.subr.mxu0 0.0
    %464 = vmatpush1.msra.mxu0 0.0
    %465 = vmatprep.subr.mxu0 0.0
    %466 = vmatpush1.msra.mxu0 0.0
    %467 = vmatprep.subr.mxu0 0.0
    %468 = vmatpush1.msra.mxu0 0.0
    %469 = vmatprep.subr.mxu0 0.0
    %470 = vmatpush1.msra.mxu0 0.0
    %471 = vmatprep.subr.mxu0 0.0
    %472 = vmatpush1.msra.mxu0 0.0
    %473 = vmatprep.subr.mxu0 0.0
    %474 = vmatpush1.msra.mxu0 0.0
    %475 = vmatprep.subr.mxu0 0.0
    %476 = vmatpush1.msra.mxu0 0.0
    %477 = vmatprep.subr.mxu0 0.0
    %478 = vmatpush1.msra.mxu0 0.0
    %479 = vmatprep.subr.mxu0 0.0
    %480 = vmatpush1.msra.mxu0 0.0
    %481 = vmatprep.subr.mxu0 0.0
    %482 = vmatpush1.msra.mxu0 0.0
    %483 = vmatprep.subr.mxu0 0.0
    %484 = vmatpush1.msra.mxu0 0.0
    %485 = vmatprep.subr.mxu0 0.0
    %486 = vmatpush1.msra.mxu0 0.0
    %487 = vmatprep.subr.mxu0 0.0
    %488 = vmatpush1.msra.mxu0 0.0
    %489 = vmatprep.subr.mxu0 0.0
    %490 = vmatpush1.msra.mxu0 0.0
    %491 = vmatprep.subr.mxu0 0.0
    %492 = vmatpush1.msra.mxu0 0.0
    %493 = vmatprep.subr.mxu0 0.0
    %494 = vmatpush1.msra.mxu0 0.0
    %495 = vmatprep.subr.mxu0 0.0
    %496 = vmatpush1.msra.mxu0 0.0
    %497 = vmatprep.subr.mxu0 0.0
    %498 = vmatpush1.msra.mxu0 0.0
    %499 = vmatprep.subr.mxu0 0.0
    %500 = vmatpush1.msra.mxu0 0.0
    %501 = vmatprep.subr.mxu0 0.0
    %502 = vmatpush1.msra.mxu0 0.0
    %503 = vmatprep.subr.mxu0 0.0
    %504 = vmatpush1.msra.mxu0 0.0
    %505 = vmatprep.subr.mxu0 0.0
    %506 = vmatpush1.msra.mxu0 0.0
    %507 = vmatprep.mubr.f32.mxu0 0.0
    %508 = vmatmul.mubr.f32.gmra.mrb[0].mxu0 %v441
    %v509 = vpop.f32.mrb[0].mxu0
    %v510 = vadd.f32 %v435, %v509
    %v511 = vpop.f32.mrb[0].mxu0
    %512 = vdwg.mxu0
    %v513 = vld [vmem:[#allocation10] sm:$0x1]
    %v515 = vlaneseq
    %v516 = vshrl.u32 %v515, 7
    %v517 = vsub.s32 0, %v516
    %v518 = vrot.slane %v513, %v517
    %v520 = vadd.f32 %v510, %v518
    %v521 = vxor.u32 %v520, 2147483648
    %v522 = vmul.f32 %v521, 1.442695
    %v523 = vpow.pop %v522
    %v524 = vadd.f32 %v523, 1.0
    %v525 = vrcp.pop %v524
    %v526 = vmul.f32 1.0, %v525
    %v527 = vtanh.pop %v520
    %v528 = vmul.f32 %v526, 0.0
    %530 = vrot.lane.b32.xlu0 %v527, 64
    %v531 = vpop.permute.xlu0 %530
    %v533 = vmul.f32 %v526, %v531
    %535 = vrot.lane.b32.xlu0 %v533, 32
    %v536 = vpop.permute.xlu0 %535
    %v538 = vadd.f32 %v528, %v536
    %v539 = vtanh.pop %v538
    %541 = vrot.lane.b32.xlu0 %v539, 64
    %v542 = vpop.permute.xlu0 %541
    %v544 = vmul.f32 %v526, %v542
    %v545 = vld [vmem:[#allocation12] sm:$0xff]
    %v546 = vld [vmem:[#allocation12 + $0x8] sm:$0xff]
    %v547 = vld [vmem:[#allocation12 + $0x10] sm:$0xff]
    %v548 = vld [vmem:[#allocation12 + $0x18] sm:$0xff]
    %v549 = vld [vmem:[%s8] sm:$0xff]
    %v550 = vld [vmem:[%s8 + $0x8] sm:$0xff]
    %v551 = vld [vmem:[%s8 + $0x10] sm:$0xff]
    %v552 = vld [vmem:[%s8 + $0x18] sm:$0xff]
    %553 = vmatprep.subr.mxu0 0.0
    %554 = vmatpush1.msra.mxu0 %v549
    %555 = vmatprep.subr.mxu0 0.0
    %556 = vmatpush1.msra.mxu0 %v550
    %557 = vmatprep.subr.mxu0 0.0
    %558 = vmatpush1.msra.mxu0 %v551
    %559 = vmatprep.subr.mxu0 0.0
    %560 = vmatpush1.msra.mxu0 %v552
    %561 = vmatprep.subr.mxu0 0.0
    %562 = vmatpush1.msra.mxu0 0.0
    %563 = vmatprep.subr.mxu0 0.0
    %564 = vmatpush1.msra.mxu0 0.0
    %565 = vmatprep.subr.mxu0 0.0
    %566 = vmatpush1.msra.mxu0 0.0
    %567 = vmatprep.subr.mxu0 0.0
    %568 = vmatpush1.msra.mxu0 0.0
    %569 = vmatprep.subr.mxu0 0.0
    %570 = vmatpush1.msra.mxu0 0.0
    %571 = vmatprep.subr.mxu0 0.0
    %572 = vmatpush1.msra.mxu0 0.0
    %573 = vmatprep.subr.mxu0 0.0
    %574 = vmatpush1.msra.mxu0 0.0
    %575 = vmatprep.subr.mxu0 0.0
    %576 = vmatpush1.msra.mxu0 0.0
    %577 = vmatprep.subr.mxu0 0.0
    %578 = vmatpush1.msra.mxu0 0.0
    %579 = vmatprep.subr.mxu0 0.0
    %580 = vmatpush1.msra.mxu0 0.0
    %581 = vmatprep.subr.mxu0 0.0
    %582 = vmatpush1.msra.mxu0 0.0
    %583 = vmatprep.subr.mxu0 0.0
    %584 = vmatpush1.msra.mxu0 0.0
    %585 = vmatprep.subr.mxu0 0.0
    %586 = vmatpush1.msra.mxu0 0.0
    %587 = vmatprep.subr.mxu0 0.0
    %588 = vmatpush1.msra.mxu0 0.0
    %589 = vmatprep.subr.mxu0 0.0
    %590 = vmatpush1.msra.mxu0 0.0
    %591 = vmatprep.subr.mxu0 0.0
    %592 = vmatpush1.msra.mxu0 0.0
    %593 = vmatprep.subr.mxu0 0.0
    %594 = vmatpush1.msra.mxu0 0.0
    %595 = vmatprep.subr.mxu0 0.0
    %596 = vmatpush1.msra.mxu0 0.0
    %597 = vmatprep.subr.mxu0 0.0
    %598 = vmatpush1.msra.mxu0 0.0
    %599 = vmatprep.subr.mxu0 0.0
    %600 = vmatpush1.msra.mxu0 0.0
    %601 = vmatprep.subr.mxu0 0.0
    %602 = vmatpush1.msra.mxu0 0.0
    %603 = vmatprep.subr.mxu0 0.0
    %604 = vmatpush1.msra.mxu0 0.0
    %605 = vmatprep.subr.mxu0 0.0
    %606 = vmatpush1.msra.mxu0 0.0
    %607 = vmatprep.subr.mxu0 0.0
    %608 = vmatpush1.msra.mxu0 0.0
    %609 = vmatprep.subr.mxu0 0.0
    %610 = vmatpush1.msra.mxu0 0.0
    %611 = vmatprep.subr.mxu0 0.0
    %612 = vmatpush1.msra.mxu0 0.0
    %613 = vmatprep.subr.mxu0 0.0
    %614 = vmatpush1.msra.mxu0 0.0
    %615 = vmatprep.subr.mxu0 0.0
    %616 = vmatpush1.msra.mxu0 0.0
    %617 = vmatprep.mubr.f32.mxu0 0.0
    %618 = vmatmul.mubr.f32.gmra.mrb[0].mxu0 %v186
    %v619 = vpop.f32.mrb[0].mxu0
    %v620 = vadd.f32 0.0, %v619
    %v621 = vpop.f32.mrb[0].mxu0
    %622 = vdwg.mxu0
    %624 = vrot.lane.b32.xlu0 %v544, 32
    %v625 = vpop.permute.xlu0 %624
    %v626 = vsel %vm184, %v625, 0
    %628 = vmatprep.subr.mxu0 0.0
    %629 = vmatpush1.msra.mxu0 %v545
    %630 = vmatprep.subr.mxu0 0.0
    %631 = vmatpush1.msra.mxu0 %v546
    %632 = vmatprep.subr.mxu0 0.0
    %633 = vmatpush1.msra.mxu0 %v547
    %634 = vmatprep.subr.mxu0 0.0
    %635 = vmatpush1.msra.mxu0 %v548
    %636 = vmatprep.subr.mxu0 0.0
    %637 = vmatpush1.msra.mxu0 0.0
    %638 = vmatprep.subr.mxu0 0.0
    %639 = vmatpush1.msra.mxu0 0.0
    %640 = vmatprep.subr.mxu0 0.0
    %641 = vmatpush1.msra.mxu0 0.0
    %642 = vmatprep.subr.mxu0 0.0
    %643 = vmatpush1.msra.mxu0 0.0
    %644 = vmatprep.subr.mxu0 0.0
    %645 = vmatpush1.msra.mxu0 0.0
    %646 = vmatprep.subr.mxu0 0.0
    %647 = vmatpush1.msra.mxu0 0.0
    %648 = vmatprep.subr.mxu0 0.0
    %649 = vmatpush1.msra.mxu0 0.0
    %650 = vmatprep.subr.mxu0 0.0
    %651 = vmatpush1.msra.mxu0 0.0
    %652 = vmatprep.subr.mxu0 0.0
    %653 = vmatpush1.msra.mxu0 0.0
    %654 = vmatprep.subr.mxu0 0.0
    %655 = vmatpush1.msra.mxu0 0.0
    %656 = vmatprep.subr.mxu0 0.0
    %657 = vmatpush1.msra.mxu0 0.0
    %658 = vmatprep.subr.mxu0 0.0
    %659 = vmatpush1.msra.mxu0 0.0
    %660 = vmatprep.subr.mxu0 0.0
    %661 = vmatpush1.msra.mxu0 0.0
    %662 = vmatprep.subr.mxu0 0.0
    %663 = vmatpush1.msra.mxu0 0.0
    %664 = vmatprep.subr.mxu0 0.0
    %665 = vmatpush1.msra.mxu0 0.0
    %666 = vmatprep.subr.mxu0 0.0
    %667 = vmatpush1.msra.mxu0 0.0
    %668 = vmatprep.subr.mxu0 0.0
    %669 = vmatpush1.msra.mxu0 0.0
    %670 = vmatprep.subr.mxu0 0.0
    %671 = vmatpush1.msra.mxu0 0.0
    %672 = vmatprep.subr.mxu0 0.0
    %673 = vmatpush1.msra.mxu0 0.0
    %674 = vmatprep.subr.mxu0 0.0
    %675 = vmatpush1.msra.mxu0 0.0
    %676 = vmatprep.subr.mxu0 0.0
    %677 = vmatpush1.msra.mxu0 0.0
    %678 = vmatprep.subr.mxu0 0.0
    %679 = vmatpush1.msra.mxu0 0.0
    %680 = vmatprep.subr.mxu0 0.0
    %681 = vmatpush1.msra.mxu0 0.0
    %682 = vmatprep.subr.mxu0 0.0
    %683 = vmatpush1.msra.mxu0 0.0
    %684 = vmatprep.subr.mxu0 0.0
    %685 = vmatpush1.msra.mxu0 0.0
    %686 = vmatprep.subr.mxu0 0.0
    %687 = vmatpush1.msra.mxu0 0.0
    %688 = vmatprep.subr.mxu0 0.0
    %689 = vmatpush1.msra.mxu0 0.0
    %690 = vmatprep.subr.mxu0 0.0
    %691 = vmatpush1.msra.mxu0 0.0
    %692 = vmatprep.mubr.f32.mxu0 0.0
    %693 = vmatmul.mubr.f32.gmra.mrb[0].mxu0 %v626
    %v694 = vpop.f32.mrb[0].mxu0
    %v695 = vadd.f32 %v620, %v694
    %v696 = vpop.f32.mrb[0].mxu0
    %697 = vdwg.mxu0
    %v698 = vld [vmem:[%s9] sm:$0x1]
    %v700 = vlaneseq
    %v701 = vshrl.u32 %v700, 7
    %v702 = vsub.s32 0, %v701
    %v703 = vrot.slane %v698, %v702
    %v705 = vadd.f32 %v695, %v703
    %v706 = vxor.u32 %v705, 2147483648
    %v707 = vmul.f32 %v706, 1.442695
    %v708 = vpow.pop %v707
    %v709 = vadd.f32 %v708, 1.0
    %v710 = vrcp.pop %v709
    %v711 = vmul.f32 1.0, %v710
    %v712 = vtanh.pop %v705
    %v713 = vmul.f32 %v711, 0.0
    %715 = vrot.lane.b32.xlu0 %v712, 64
    %v716 = vpop.permute.xlu0 %715
    %v718 = vmul.f32 %v711, %v716
    %720 = vrot.lane.b32.xlu0 %v718, 32
    %v721 = vpop.permute.xlu0 %720
    %v723 = vadd.f32 %v713, %v721
    %v724 = vtanh.pop %v723
    %726 = vrot.lane.b32.xlu0 %v724, 64
    %v727 = vpop.permute.xlu0 %726
    %v729 = vmul.f32 %v711, %v727
    %v730 = vld [vmem:[#allocation13] sm:$0xff]
    %v731 = vld [vmem:[#allocation13 + $0x8] sm:$0xff]
    %v732 = vld [vmem:[#allocation13 + $0x10] sm:$0xff]
    %v733 = vld [vmem:[#allocation13 + $0x18] sm:$0xff]
    %v734 = vld [vmem:[#allocation15] sm:$0xff]
    %v735 = vld [vmem:[#allocation15 + $0x8] sm:$0xff]
    %v736 = vld [vmem:[#allocation15 + $0x10] sm:$0xff]
    %v737 = vld [vmem:[#allocation15 + $0x18] sm:$0xff]
    %738 = vmatprep.subr.mxu0 0.0
    %739 = vmatpush1.msra.mxu0 %v734
    %740 = vmatprep.subr.mxu0 0.0
    %741 = vmatpush1.msra.mxu0 %v735
    %742 = vmatprep.subr.mxu0 0.0
    %743 = vmatpush1.msra.mxu0 %v736
    %744 = vmatprep.subr.mxu0 0.0
    %745 = vmatpush1.msra.mxu0 %v737
    %746 = vmatprep.subr.mxu0 0.0
    %747 = vmatpush1.msra.mxu0 0.0
    %748 = vmatprep.subr.mxu0 0.0
    %749 = vmatpush1.msra.mxu0 0.0
    %750 = vmatprep.subr.mxu0 0.0
    %751 = vmatpush1.msra.mxu0 0.0
    %752 = vmatprep.subr.mxu0 0.0
    %753 = vmatpush1.msra.mxu0 0.0
    %754 = vmatprep.subr.mxu0 0.0
    %755 = vmatpush1.msra.mxu0 0.0
    %756 = vmatprep.subr.mxu0 0.0
    %757 = vmatpush1.msra.mxu0 0.0
    %758 = vmatprep.subr.mxu0 0.0
    %759 = vmatpush1.msra.mxu0 0.0
    %760 = vmatprep.subr.mxu0 0.0
    %761 = vmatpush1.msra.mxu0 0.0
    %762 = vmatprep.subr.mxu0 0.0
    %763 = vmatpush1.msra.mxu0 0.0
    %764 = vmatprep.subr.mxu0 0.0
    %765 = vmatpush1.msra.mxu0 0.0
    %766 = vmatprep.subr.mxu0 0.0
    %767 = vmatpush1.msra.mxu0 0.0
    %768 = vmatprep.subr.mxu0 0.0
    %769 = vmatpush1.msra.mxu0 0.0
    %770 = vmatprep.subr.mxu0 0.0
    %771 = vmatpush1.msra.mxu0 0.0
    %772 = vmatprep.subr.mxu0 0.0
    %773 = vmatpush1.msra.mxu0 0.0
    %774 = vmatprep.subr.mxu0 0.0
    %775 = vmatpush1.msra.mxu0 0.0
    %776 = vmatprep.subr.mxu0 0.0
    %777 = vmatpush1.msra.mxu0 0.0
    %778 = vmatprep.subr.mxu0 0.0
    %779 = vmatpush1.msra.mxu0 0.0
    %780 = vmatprep.subr.mxu0 0.0
    %781 = vmatpush1.msra.mxu0 0.0
    %782 = vmatprep.subr.mxu0 0.0
    %783 = vmatpush1.msra.mxu0 0.0
    %784 = vmatprep.subr.mxu0 0.0
    %785 = vmatpush1.msra.mxu0 0.0
    %786 = vmatprep.subr.mxu0 0.0
    %787 = vmatpush1.msra.mxu0 0.0
    %788 = vmatprep.subr.mxu0 0.0
    %789 = vmatpush1.msra.mxu0 0.0
    %790 = vmatprep.subr.mxu0 0.0
    %791 = vmatpush1.msra.mxu0 0.0
    %792 = vmatprep.subr.mxu0 0.0
    %793 = vmatpush1.msra.mxu0 0.0
    %794 = vmatprep.subr.mxu0 0.0
    %795 = vmatpush1.msra.mxu0 0.0
    %796 = vmatprep.subr.mxu0 0.0
    %797 = vmatpush1.msra.mxu0 0.0
    %798 = vmatprep.subr.mxu0 0.0
    %799 = vmatpush1.msra.mxu0 0.0
    %800 = vmatprep.subr.mxu0 0.0
    %801 = vmatpush1.msra.mxu0 0.0
    %802 = vmatprep.mubr.f32.mxu0 0.0
    %803 = vmatmul.mubr.f32.gmra.mrb[0].mxu0 %v186
    %v804 = vpop.f32.mrb[0].mxu0
    %v805 = vadd.f32 0.0, %v804
    %v806 = vpop.f32.mrb[0].mxu0
    %807 = vdwg.mxu0
    %809 = vrot.lane.b32.xlu0 %v729, 32
    %v810 = vpop.permute.xlu0 %809
    %v811 = vsel %vm184, %v810, 0
    %813 = vmatprep.subr.mxu0 0.0
    %814 = vmatpush1.msra.mxu0 %v730
    %815 = vmatprep.subr.mxu0 0.0
    %816 = vmatpush1.msra.mxu0 %v731
    %817 = vmatprep.subr.mxu0 0.0
    %818 = vmatpush1.msra.mxu0 %v732
    %819 = vmatprep.subr.mxu0 0.0
    %820 = vmatpush1.msra.mxu0 %v733
    %821 = vmatprep.subr.mxu0 0.0
    %822 = vmatpush1.msra.mxu0 0.0
    %823 = vmatprep.subr.mxu0 0.0
    %824 = vmatpush1.msra.mxu0 0.0
    %825 = vmatprep.subr.mxu0 0.0
    %826 = vmatpush1.msra.mxu0 0.0
    %827 = vmatprep.subr.mxu0 0.0
    %828 = vmatpush1.msra.mxu0 0.0
    %829 = vmatprep.subr.mxu0 0.0
    %830 = vmatpush1.msra.mxu0 0.0
    %831 = vmatprep.subr.mxu0 0.0
    %832 = vmatpush1.msra.mxu0 0.0
    %833 = vmatprep.subr.mxu0 0.0
    %834 = vmatpush1.msra.mxu0 0.0
    %835 = vmatprep.subr.mxu0 0.0
    %836 = vmatpush1.msra.mxu0 0.0
    %837 = vmatprep.subr.mxu0 0.0
    %838 = vmatpush1.msra.mxu0 0.0
    %839 = vmatprep.subr.mxu0 0.0
    %840 = vmatpush1.msra.mxu0 0.0
    %841 = vmatprep.subr.mxu0 0.0
    %842 = vmatpush1.msra.mxu0 0.0
    %843 = vmatprep.subr.mxu0 0.0
    %844 = vmatpush1.msra.mxu0 0.0
    %845 = vmatprep.subr.mxu0 0.0
    %846 = vmatpush1.msra.mxu0 0.0
    %847 = vmatprep.subr.mxu0 0.0
    %848 = vmatpush1.msra.mxu0 0.0
    %849 = vmatprep.subr.mxu0 0.0
    %850 = vmatpush1.msra.mxu0 0.0
    %851 = vmatprep.subr.mxu0 0.0
    %852 = vmatpush1.msra.mxu0 0.0
    %853 = vmatprep.subr.mxu0 0.0
    %854 = vmatpush1.msra.mxu0 0.0
    %855 = vmatprep.subr.mxu0 0.0
    %856 = vmatpush1.msra.mxu0 0.0
    %857 = vmatprep.subr.mxu0 0.0
    %858 = vmatpush1.msra.mxu0 0.0
    %859 = vmatprep.subr.mxu0 0.0
    %860 = vmatpush1.msra.mxu0 0.0
    %861 = vmatprep.subr.mxu0 0.0
    %862 = vmatpush1.msra.mxu0 0.0
    %863 = vmatprep.subr.mxu0 0.0
    %864 = vmatpush1.msra.mxu0 0.0
    %865 = vmatprep.subr.mxu0 0.0
    %866 = vmatpush1.msra.mxu0 0.0
    %867 = vmatprep.subr.mxu0 0.0
    %868 = vmatpush1.msra.mxu0 0.0
    %869 = vmatprep.subr.mxu0 0.0
    %870 = vmatpush1.msra.mxu0 0.0
    %871 = vmatprep.subr.mxu0 0.0
    %872 = vmatpush1.msra.mxu0 0.0
    %873 = vmatprep.subr.mxu0 0.0
    %874 = vmatpush1.msra.mxu0 0.0
    %875 = vmatprep.subr.mxu0 0.0
    %876 = vmatpush1.msra.mxu0 0.0
    %877 = vmatprep.mubr.f32.mxu0 0.0
    %878 = vmatmul.mubr.f32.gmra.mrb[0].mxu0 %v811
    %v879 = vpop.f32.mrb[0].mxu0
    %v880 = vadd.f32 %v805, %v879
    %v881 = vpop.f32.mrb[0].mxu0
    %882 = vdwg.mxu0
    %v883 = vld [vmem:[%s12] sm:$0x1]
    %v885 = vlaneseq
    %v886 = vshrl.u32 %v885, 7
    %v887 = vsub.s32 0, %v886
    %v888 = vrot.slane %v883, %v887
    %v890 = vadd.f32 %v880, %v888
    %v891 = vxor.u32 %v890, 2147483648
    %v892 = vmul.f32 %v891, 1.442695
    %v893 = vpow.pop %v892
    %v894 = vadd.f32 %v893, 1.0
    %v895 = vrcp.pop %v894
    %v896 = vmul.f32 1.0, %v895
    %v897 = vtanh.pop %v890
    %v898 = vmul.f32 %v896, 0.0
    %900 = vrot.lane.b32.xlu0 %v897, 64
    %v901 = vpop.permute.xlu0 %900
    %v903 = vmul.f32 %v896, %v901
    %905 = vrot.lane.b32.xlu0 %v903, 32
    %v906 = vpop.permute.xlu0 %905
    %v908 = vadd.f32 %v898, %v906
    %v909 = vtanh.pop %v908
    %911 = vrot.lane.b32.xlu0 %v909, 64
    %v912 = vpop.permute.xlu0 %911
    %v914 = vmul.f32 %v896, %v912
    %v915 = vmax.f32 %v914, 0.0
    %v916 = vld [vmem:[%s13] sm:$0xff]
    %v917 = vld [vmem:[%s13 + $0x8] sm:$0xff]
    %v918 = vld [vmem:[%s13 + $0x10] sm:$0xff]
    %v919 = vld [vmem:[%s13 + $0x18] sm:$0xff]
    %921 = vrot.lane.b32.xlu0 %v915, 32
    %v922 = vpop.permute.xlu0 %921
    %v923 = vsel %vm184, %v922, 0
    %925 = vmatprep.subr.mxu0 0.0
    %926 = vmatpush1.msra.mxu0 %v916
    %927 = vmatprep.subr.mxu0 0.0
    %928 = vmatpush1.msra.mxu0 %v917
    %929 = vmatprep.subr.mxu0 0.0
    %930 = vmatpush1.msra.mxu0 %v918
    %931 = vmatprep.subr.mxu0 0.0
    %932 = vmatpush1.msra.mxu0 %v919
    %933 = vmatprep.subr.mxu0 0.0
    %934 = vmatpush1.msra.mxu0 0.0
    %935 = vmatprep.subr.mxu0 0.0
    %936 = vmatpush1.msra.mxu0 0.0
    %937 = vmatprep.subr.mxu0 0.0
    %938 = vmatpush1.msra.mxu0 0.0
    %939 = vmatprep.subr.mxu0 0.0
    %940 = vmatpush1.msra.mxu0 0.0
    %941 = vmatprep.subr.mxu0 0.0
    %942 = vmatpush1.msra.mxu0 0.0
    %943 = vmatprep.subr.mxu0 0.0
    %944 = vmatpush1.msra.mxu0 0.0
    %945 = vmatprep.subr.mxu0 0.0
    %946 = vmatpush1.msra.mxu0 0.0
    %947 = vmatprep.subr.mxu0 0.0
    %948 = vmatpush1.msra.mxu0 0.0
    %949 = vmatprep.subr.mxu0 0.0
    %950 = vmatpush1.msra.mxu0 0.0
    %951 = vmatprep.subr.mxu0 0.0
    %952 = vmatpush1.msra.mxu0 0.0
    %953 = vmatprep.subr.mxu0 0.0
    %954 = vmatpush1.msra.mxu0 0.0
    %955 = vmatprep.subr.mxu0 0.0
    %956 = vmatpush1.msra.mxu0 0.0
    %957 = vmatprep.subr.mxu0 0.0
    %958 = vmatpush1.msra.mxu0 0.0
    %959 = vmatprep.subr.mxu0 0.0
    %960 = vmatpush1.msra.mxu0 0.0
    %961 = vmatprep.subr.mxu0 0.0
    %962 = vmatpush1.msra.mxu0 0.0
    %963 = vmatprep.subr.mxu0 0.0
    %964 = vmatpush1.msra.mxu0 0.0
    %965 = vmatprep.subr.mxu0 0.0
    %966 = vmatpush1.msra.mxu0 0.0
    %967 = vmatprep.subr.mxu0 0.0
    %968 = vmatpush1.msra.mxu0 0.0
    %969 = vmatprep.subr.mxu0 0.0
    %970 = vmatpush1.msra.mxu0 0.0
    %971 = vmatprep.subr.mxu0 0.0
    %972 = vmatpush1.msra.mxu0 0.0
    %973 = vmatprep.subr.mxu0 0.0
    %974 = vmatpush1.msra.mxu0 0.0
    %975 = vmatprep.subr.mxu0 0.0
    %976 = vmatpush1.msra.mxu0 0.0
    %977 = vmatprep.subr.mxu0 0.0
    %978 = vmatpush1.msra.mxu0 0.0
    %979 = vmatprep.subr.mxu0 0.0
    %980 = vmatpush1.msra.mxu0 0.0
    %981 = vmatprep.subr.mxu0 0.0
    %982 = vmatpush1.msra.mxu0 0.0
    %983 = vmatprep.subr.mxu0 0.0
    %984 = vmatpush1.msra.mxu0 0.0
    %985 = vmatprep.subr.mxu0 0.0
    %986 = vmatpush1.msra.mxu0 0.0
    %987 = vmatprep.subr.mxu0 0.0
    %988 = vmatpush1.msra.mxu0 0.0
    %989 = vmatprep.mubr.f32.mxu0 0.0
    %990 = vmatmul.mubr.f32.gmra.mrb[0].mxu0 %v923
    %v991 = vpop.f32.mrb[0].mxu0
    %v992 = vadd.f32 0.0, %v991
    %v993 = vpop.f32.mrb[0].mxu0
    %994 = vdwg.mxu0
    %vm995 = vcmask 15360
    %996 = vst.msk [vmem:[%s14] sm:$0xff] %vm995, %v992
    // Predicated region
    $region94: #{tpu_custom_call.1} parent=1 // pred_check
      _
    $region95: #{tpu_custom_call.1} parent=1 // pred_check_branch
      %998 = sbr.rel (0) target = $region97
    $region96: #{tpu_custom_call.1} parent=1 // pred_region
      _
    $region97: #{tpu_custom_call.1} parent=1 // pred_fallthru
      _
    // Predicated region
    $region98: #{tpu_custom_call.1} parent=1 // pred_check
      _
    $region99: #{tpu_custom_call.1} parent=1 // pred_check_branch
      %1000 = sbr.rel (0) target = $region101
    $region100: #{tpu_custom_call.1} parent=1 // pred_region
      _
    $region101: #{tpu_custom_call.1} parent=1 // pred_fallthru
      _
    %1001 = vsyncpa [#allocation3], 1
    %1002 = vsyncpa [#allocation5], 1
    %1003 = vsyncpa [#allocation8], 1
    %1004 = vsyncpa [#allocation11], 1
    %1005 = vsyncpa [#allocation14], 1

</llo_original>
